<compile_context>
chip_gen: v6e
topology: v6e:2x2x1
jax: 0.10.0
libtpu: 0.0.40
codegen_flags: <defaults>
</compile_context>

<pallas_src>
import functools

import jax
import jax.numpy as jnp
import numpy as np
from jax.experimental import pallas as pl
from jax.experimental.pallas import tpu as pltpu


# ----------------------------- Pallas kernel --------------------------------
def cacnn_kernel(x_ref, pool_ref,
                 w1_ref, s1_ref, t1_ref,
                 w2_ref, s2_ref, t2_ref,
                 w3_ref, s3_ref, t3_ref,
                 wa1_ref, wa2_ref, wf_ref, bf_ref,
                 out_ref, *, sample_len: int, is_attention: bool):
    M = x_ref.shape[0]          # M = B * L   (batch folded into sublanes)
    L = sample_len

    # Per-row position inside its sample; built once and reused by every layer.
    pos = jax.lax.broadcasted_iota(jnp.int32, (M, 1), 0) % L

    def conv_bn_relu(h, stride, w_ref, s_ref, t_ref):
        # Neighbours via XLU sublane rotation + per-sample zero-padding masks
        # (replaces the old shift-matrix matmuls).
        h_prev = pltpu.roll(h, stride, axis=0)          # row r <- row r-stride (wraps)
        h_next = pltpu.roll(h, M - stride, axis=0)      # row r <- row r+stride (wraps)
        h_prev = jnp.where(pos == 0, 0.0, h_prev)            # left zero-pad per sample
        h_next = jnp.where(pos == L - stride, 0.0, h_next)   # right zero-pad per sample
        # Fuse the 3 taps into a single MXU matmul: (M, 3*Cin) @ (3*Cin, Cout), bf16 in,
        # f32 accumulation.
        hcat = jnp.concatenate([h_prev, h, h_next], axis=-1).astype(jnp.bfloat16)
        y = jnp.dot(hcat, w_ref[...], preferred_element_type=jnp.float32)
        y = y * s_ref[...] + t_ref[...]                 # folded BatchNorm (eval) + bias
        return jnp.maximum(y, 0.0)                      # ReLU

    def avg_pool2(h, stride):
        # AvgPool1d(2,2) in the dilated layout: valid rows remain at pos % (2*stride)==0,
        # each holding the mean of rows (pos, pos+stride).  Pure VPU add+scale.
        return 0.5 * (h + pltpu.roll(h, M - stride, axis=0))

    h = x_ref[...]                                      # (M, Cin) f32, stride 1
    h = conv_bn_relu(h, 1, w1_ref, s1_ref, t1_ref)      # (M, 32)
    h = avg_pool2(h, 1)                                 # valid rows: pos % 2 == 0
    h = conv_bn_relu(h, 2, w2_ref, s2_ref, t2_ref)      # (M, 32), stride 2
    h = avg_pool2(h, 2)                                 # valid rows: pos % 4 == 0
    h = conv_bn_relu(h, 4, w3_ref, s3_ref, t3_ref)      # (M, 32), stride 4

    # Adaptive avg pool per sample: one tiny segmented reduce (B, M) @ (M, 32);
    # pool_ref carries 1/(L/4) on each sample's valid stride-4 rows, 0 elsewhere.
    pooled = jnp.dot(pool_ref[...], h, preferred_element_type=jnp.float32)   # (B, 32)

    feat = pooled
    if is_attention:                                    # Channel_Attention
        z = jnp.dot(pooled, wa1_ref[...], preferred_element_type=jnp.float32)   # (B, 16)
        z = jnp.where(z > 0, z, 0.01 * z)               # LeakyReLU(0.01)
        a = jax.nn.sigmoid(jnp.dot(z, wa2_ref[...],
                                   preferred_element_type=jnp.float32))         # (B, 32)
        # attn weight is constant over length, so scaling before or after the final
        # average pool is identical.
        feat = pooled * a

    # Single store for the whole (B, 2) output.
    out_ref[...] = jnp.dot(feat, wf_ref[...],
                           preferred_element_type=jnp.float32) + bf_ref[...]


# ------------------------------- wrapper -------------------------------------
def cacnn_forward(x, params, *, is_attention=True):
    B, L, Cin = x.shape
    assert L % 4 == 0, "sample_len must be divisible by 4 (two AvgPool(2,2) stages)"
    M = B * L
    x2d = x.reshape(M, Cin)                             # fold batch into sublanes

    # Segmented adaptive-avg-pool matrix: row b averages sample b's L//4 valid rows.
    r = jnp.arange(M)
    pool_mat = jnp.where(
        (r[None, :] // L == jnp.arange(B)[:, None]) & (r[None, :] % 4 == 0),
        4.0 / L, 0.0).astype(jnp.float32)               # (B, M)

    def wcat(w):   # (3, Cin, Cout) -> (3*Cin, Cout), bf16 for the MXU
        return w.reshape(-1, w.shape[-1]).astype(jnp.bfloat16)

    args = (x2d, pool_mat,
            wcat(params["w1"]), params["s1"], params["t1"],
            wcat(params["w2"]), params["s2"], params["t2"],
            wcat(params["w3"]), params["s3"], params["t3"],
            params["wa1"], params["wa2"], params["wf"], params["bf"])
    vmem = pl.BlockSpec(memory_space=pltpu.MemorySpace.VMEM)
    return pl.pallas_call(
        functools.partial(cacnn_kernel, sample_len=L, is_attention=is_attention),
        out_shape=jax.ShapeDtypeStruct((B, 2), jnp.float32),
        in_specs=[vmem] * len(args),
        out_specs=vmem,
    )(*args)


# --------------------------- parameter construction --------------------------
def fold_bn(conv_bias, gamma, beta, mean, var, eps=1e-5):
    scale = gamma / jnp.sqrt(var + eps)
    shift = (conv_bias - mean) * scale + beta
    return scale.reshape(1, -1), shift.reshape(1, -1)


def init_params(key, channels_num):
    ks = jax.random.split(key, 20)
    def n(k, shape, s=0.2):
        return (s * jax.random.normal(k, shape)).astype(jnp.float32)

    p = {}
    # conv1 / bn1   (PyTorch conv weight (Cout,Cin,K) stored here as (K,Cin,Cout))
    w1 = n(ks[0], (3, channels_num, 32)); b1 = n(ks[1], (32,), 0.1)
    g1 = 1.0 + n(ks[2], (32,), 0.1); be1 = n(ks[3], (32,), 0.1)
    m1 = n(ks[4], (32,), 0.1); v1 = 0.5 + jnp.abs(n(ks[5], (32,), 0.2))
    p["w1"] = w1; p["s1"], p["t1"] = fold_bn(b1, g1, be1, m1, v1)
    # conv2 / bn2
    w2 = n(ks[6], (3, 32, 32)); b2 = n(ks[7], (32,), 0.1)
    g2 = 1.0 + n(ks[8], (32,), 0.1); be2 = n(ks[9], (32,), 0.1)
    m2 = n(ks[10], (32,), 0.1); v2 = 0.5 + jnp.abs(n(ks[11], (32,), 0.2))
    p["w2"] = w2; p["s2"], p["t2"] = fold_bn(b2, g2, be2, m2, v2)
    # conv3 / bn3
    w3 = n(ks[12], (3, 32, 32)); b3 = n(ks[13], (32,), 0.1)
    g3 = 1.0 + n(ks[14], (32,), 0.1); be3 = n(ks[15], (32,), 0.1)
    m3 = n(ks[16], (32,), 0.1); v3 = 0.5 + jnp.abs(n(ks[17], (32,), 0.2))
    p["w3"] = w3; p["s3"], p["t3"] = fold_bn(b3, g3, be3, m3, v3)
    # channel attention (Linear weights stored already transposed: (in, out), no bias)
    p["wa1"] = n(ks[18], (32, 16))
    p["wa2"] = n(ks[19], (16, 32))
    # classifier head (stored transposed: (32, 2))
    kf1, kf2 = jax.random.split(jax.random.fold_in(key, 123))
    p["wf"] = n(kf1, (32, 2))
    p["bf"] = n(kf2, (1, 2), 0.1)
    return p


# ------------------------------ pure-JAX reference ---------------------------
def ref_forward(x, p, *, is_attention=True):
    def conv(h, w):  # h: (B, L, C)
        hp = jnp.pad(h, ((0, 0), (1, 1), (0, 0)))
        Lc = h.shape[1]
        return sum(jnp.einsum("blc,cd->bld", hp[:, k:k + Lc, :], w[k]) for k in range(3))

    def block(h, w, s, t):
        return jnp.maximum(conv(h, w) * s + t, 0.0)

    def pool(h):
        B_, Lc, C = h.shape
        return h.reshape(B_, Lc // 2, 2, C).mean(axis=2)

    h = pool(block(x, p["w1"], p["s1"], p["t1"]))
    h = pool(block(h, p["w2"], p["s2"], p["t2"]))
    h = block(h, p["w3"], p["s3"], p["t3"])
    if is_attention:
        y = h.mean(axis=1, keepdims=True)
        z = y @ p["wa1"]
        z = jnp.where(z > 0, z, 0.01 * z)
        a = jax.nn.sigmoid(z @ p["wa2"])
        h = h * a
    return h.mean(axis=1) @ p["wf"] + p["bf"]


# ----------------------------------- main -------------------------------------
if __name__ == "__main__":
    B, L, C_IN = 2, 16, 4          # batch, sample_len, channels_num
    key = jax.random.PRNGKey(0)
    kx, kp = jax.random.split(key)
    x = jax.random.normal(kx, (B, L, C_IN), dtype=jnp.float32)
    params = init_params(kp, C_IN)

    out = jax.block_until_ready(cacnn_forward(x, params, is_attention=True))
    ref = jax.block_until_ready(ref_forward(x, params, is_attention=True))
    assert out.shape == (B, 2)
    # Conv matmuls run with bf16 operands (f32 accumulation), so compare with
    # bf16-appropriate tolerances against the f32 reference.
    np.testing.assert_allclose(np.asarray(out), np.asarray(ref), rtol=5e-2, atol=1e-2)
    print("KERNEL_OK")
</pallas_src>

<mosaic_0001>
module attributes {stable_mosaic.version = 11 : i64} {
  func.func @cacnn_kernel(%arg0: memref<32x4xf32, #tpu.memory_space<vmem>>, %arg1: memref<2x32xf32, #tpu.memory_space<vmem>>, %arg2: memref<12x32xbf16, #tpu.memory_space<vmem>>, %arg3: memref<1x32xf32, #tpu.memory_space<vmem>>, %arg4: memref<1x32xf32, #tpu.memory_space<vmem>>, %arg5: memref<96x32xbf16, #tpu.memory_space<vmem>>, %arg6: memref<1x32xf32, #tpu.memory_space<vmem>>, %arg7: memref<1x32xf32, #tpu.memory_space<vmem>>, %arg8: memref<96x32xbf16, #tpu.memory_space<vmem>>, %arg9: memref<1x32xf32, #tpu.memory_space<vmem>>, %arg10: memref<1x32xf32, #tpu.memory_space<vmem>>, %arg11: memref<32x16xf32, #tpu.memory_space<vmem>>, %arg12: memref<16x32xf32, #tpu.memory_space<vmem>>, %arg13: memref<32x2xf32, #tpu.memory_space<vmem>>, %arg14: memref<1x2xf32, #tpu.memory_space<vmem>>, %arg15: memref<2x2xf32, #tpu.memory_space<vmem>>) attributes {dimension_semantics = [], scalar_prefetch = 0 : i64, scratch_operands = 0 : i64, tpu.core_type = #tpu.core_type<tc>} {
    %0 = tpu.iota {dimensions = array<i32: 0>} : vector<32x1xi32>
    %c16_i32 = arith.constant 16 : i32
    %c0_i32 = arith.constant 0 : i32
    %1 = arith.cmpi eq, %c16_i32, %c0_i32 : i32
    %c1_i32 = arith.constant 1 : i32
    %2 = arith.select %1, %c1_i32, %c16_i32 : i32
    %3 = vector.broadcast %2 : i32 to vector<32x1xi32>
    %4 = arith.remsi %0, %3 : vector<32x1xi32>
    %c0_i32_0 = arith.constant 0 : i32
    %5 = vector.broadcast %c0_i32_0 : i32 to vector<32x1xi32>
    %6 = arith.cmpi ne, %4, %5 : vector<32x1xi32>
    %c0_i32_1 = arith.constant 0 : i32
    %7 = vector.broadcast %c0_i32_1 : i32 to vector<32x1xi32>
    %8 = arith.cmpi slt, %4, %7 : vector<32x1xi32>
    %c0_i32_2 = arith.constant 0 : i32
    %9 = arith.cmpi slt, %2, %c0_i32_2 : i32
    %10 = vector.broadcast %9 : i1 to vector<32x1xi1>
    %11 = vector.broadcast %10 : vector<32x1xi1> to vector<32x1xi1>
    %12 = arith.xori %8, %11 : vector<32x1xi1>
    %13 = arith.andi %12, %6 : vector<32x1xi1>
    %14 = vector.broadcast %2 : i32 to vector<32x1xi32>
    %15 = arith.addi %4, %14 : vector<32x1xi32>
    %16 = arith.select %13, %15, %4 : vector<32x1xi1>, vector<32x1xi32>
    %c0 = arith.constant 0 : index
    %c0_3 = arith.constant 0 : index
    %17 = vector.load %arg0[%c0, %c0_3] : memref<32x4xf32, #tpu.memory_space<vmem>>, vector<32x4xf32>
    %c1_i32_4 = arith.constant 1 : i32
    %18 = tpu.dynamic_rotate %17 by %c1_i32_4 dim 0 : vector<32x4xf32>, i32 -> vector<32x4xf32>
    %c31_i32 = arith.constant 31 : i32
    %19 = tpu.dynamic_rotate %17 by %c31_i32 dim 0 : vector<32x4xf32>, i32 -> vector<32x4xf32>
    %c0_i32_5 = arith.constant 0 : i32
    %20 = vector.broadcast %c0_i32_5 : i32 to vector<32x1xi32>
    %21 = arith.cmpi eq, %16, %20 : vector<32x1xi32>
    %cst = arith.constant 0.000000e+00 : f32
    %22 = vector.shape_cast %21 : vector<32x1xi1> to vector<32x1xi1>
    %23 = vector.broadcast %22 : vector<32x1xi1> to vector<32x4xi1>
    %24 = vector.broadcast %cst : f32 to vector<32x4xf32>
    %25 = arith.select %23, %24, %18 : vector<32x4xi1>, vector<32x4xf32>
    %c15_i32 = arith.constant 15 : i32
    %26 = vector.broadcast %c15_i32 : i32 to vector<32x1xi32>
    %27 = arith.cmpi eq, %16, %26 : vector<32x1xi32>
    %cst_6 = arith.constant 0.000000e+00 : f32
    %28 = vector.shape_cast %27 : vector<32x1xi1> to vector<32x1xi1>
    %29 = vector.broadcast %28 : vector<32x1xi1> to vector<32x4xi1>
    %30 = vector.broadcast %cst_6 : f32 to vector<32x4xf32>
    %31 = arith.select %29, %30, %19 : vector<32x4xi1>, vector<32x4xf32>
    %32 = tpu.concatenate %25, %17, %31 in 1 : vector<32x4xf32>, vector<32x4xf32>, vector<32x4xf32> -> vector<32x12xf32>
    %33 = arith.truncf %32 : vector<32x12xf32> to vector<32x12xbf16>
    %c0_7 = arith.constant 0 : index
    %c0_8 = arith.constant 0 : index
    %34 = vector.load %arg2[%c0_7, %c0_8] : memref<12x32xbf16, #tpu.memory_space<vmem>>, vector<12x32xbf16>
    %cst_9 = arith.constant dense<0.000000e+00> : vector<32x32xf32>
    %35 = tpu.matmul %33, %34, %cst_9 {dimension_numbers = #tpu.dot_dimension_numbers<[1], [0], [0], [1], [0, 0, 1, 1], [], []>} : vector<32x12xbf16>, vector<12x32xbf16>, vector<32x32xf32> -> vector<32x32xf32>
    %c0_10 = arith.constant 0 : index
    %c0_11 = arith.constant 0 : index
    %36 = vector.load %arg3[%c0_10, %c0_11] : memref<1x32xf32, #tpu.memory_space<vmem>>, vector<1x32xf32>
    %37 = vector.broadcast %36 : vector<1x32xf32> to vector<32x32xf32>
    %38 = arith.mulf %35, %37 : vector<32x32xf32>
    %c0_12 = arith.constant 0 : index
    %c0_13 = arith.constant 0 : index
    %39 = vector.load %arg4[%c0_12, %c0_13] : memref<1x32xf32, #tpu.memory_space<vmem>>, vector<1x32xf32>
    %40 = vector.broadcast %39 : vector<1x32xf32> to vector<32x32xf32>
    %41 = arith.addf %38, %40 : vector<32x32xf32>
    %cst_14 = arith.constant 0.000000e+00 : f32
    %42 = vector.broadcast %cst_14 : f32 to vector<32x32xf32>
    %43 = arith.maximumf %41, %42 : vector<32x32xf32>
    %c31_i32_15 = arith.constant 31 : i32
    %44 = tpu.dynamic_rotate %43 by %c31_i32_15 dim 0 : vector<32x32xf32>, i32 -> vector<32x32xf32>
    %45 = arith.addf %43, %44 : vector<32x32xf32>
    %cst_16 = arith.constant 5.000000e-01 : f32
    %46 = vector.broadcast %cst_16 : f32 to vector<32x32xf32>
    %47 = arith.mulf %46, %45 : vector<32x32xf32>
    %c2_i32 = arith.constant 2 : i32
    %48 = tpu.dynamic_rotate %47 by %c2_i32 dim 0 : vector<32x32xf32>, i32 -> vector<32x32xf32>
    %c30_i32 = arith.constant 30 : i32
    %49 = tpu.dynamic_rotate %47 by %c30_i32 dim 0 : vector<32x32xf32>, i32 -> vector<32x32xf32>
    %c0_i32_17 = arith.constant 0 : i32
    %50 = vector.broadcast %c0_i32_17 : i32 to vector<32x1xi32>
    %51 = arith.cmpi eq, %16, %50 : vector<32x1xi32>
    %cst_18 = arith.constant 0.000000e+00 : f32
    %52 = vector.shape_cast %51 : vector<32x1xi1> to vector<32x1xi1>
    %53 = vector.broadcast %52 : vector<32x1xi1> to vector<32x32xi1>
    %54 = vector.broadcast %cst_18 : f32 to vector<32x32xf32>
    %55 = arith.select %53, %54, %48 : vector<32x32xi1>, vector<32x32xf32>
    %c14_i32 = arith.constant 14 : i32
    %56 = vector.broadcast %c14_i32 : i32 to vector<32x1xi32>
    %57 = arith.cmpi eq, %16, %56 : vector<32x1xi32>
    %cst_19 = arith.constant 0.000000e+00 : f32
    %58 = vector.shape_cast %57 : vector<32x1xi1> to vector<32x1xi1>
    %59 = vector.broadcast %58 : vector<32x1xi1> to vector<32x32xi1>
    %60 = vector.broadcast %cst_19 : f32 to vector<32x32xf32>
    %61 = arith.select %59, %60, %49 : vector<32x32xi1>, vector<32x32xf32>
    %62 = tpu.concatenate %55, %47, %61 in 1 : vector<32x32xf32>, vector<32x32xf32>, vector<32x32xf32> -> vector<32x96xf32>
    %63 = arith.truncf %62 : vector<32x96xf32> to vector<32x96xbf16>
    %c0_20 = arith.constant 0 : index
    %c0_21 = arith.constant 0 : index
    %64 = vector.load %arg5[%c0_20, %c0_21] : memref<96x32xbf16, #tpu.memory_space<vmem>>, vector<96x32xbf16>
    %cst_22 = arith.constant dense<0.000000e+00> : vector<32x32xf32>
    %65 = tpu.matmul %63, %64, %cst_22 {dimension_numbers = #tpu.dot_dimension_numbers<[1], [0], [0], [1], [0, 0, 1, 1], [], []>} : vector<32x96xbf16>, vector<96x32xbf16>, vector<32x32xf32> -> vector<32x32xf32>
    %c0_23 = arith.constant 0 : index
    %c0_24 = arith.constant 0 : index
    %66 = vector.load %arg6[%c0_23, %c0_24] : memref<1x32xf32, #tpu.memory_space<vmem>>, vector<1x32xf32>
    %67 = vector.broadcast %66 : vector<1x32xf32> to vector<32x32xf32>
    %68 = arith.mulf %65, %67 : vector<32x32xf32>
    %c0_25 = arith.constant 0 : index
    %c0_26 = arith.constant 0 : index
    %69 = vector.load %arg7[%c0_25, %c0_26] : memref<1x32xf32, #tpu.memory_space<vmem>>, vector<1x32xf32>
    %70 = vector.broadcast %69 : vector<1x32xf32> to vector<32x32xf32>
    %71 = arith.addf %68, %70 : vector<32x32xf32>
    %cst_27 = arith.constant 0.000000e+00 : f32
    %72 = vector.broadcast %cst_27 : f32 to vector<32x32xf32>
    %73 = arith.maximumf %71, %72 : vector<32x32xf32>
    %c30_i32_28 = arith.constant 30 : i32
    %74 = tpu.dynamic_rotate %73 by %c30_i32_28 dim 0 : vector<32x32xf32>, i32 -> vector<32x32xf32>
    %75 = arith.addf %73, %74 : vector<32x32xf32>
    %cst_29 = arith.constant 5.000000e-01 : f32
    %76 = vector.broadcast %cst_29 : f32 to vector<32x32xf32>
    %77 = arith.mulf %76, %75 : vector<32x32xf32>
    %c4_i32 = arith.constant 4 : i32
    %78 = tpu.dynamic_rotate %77 by %c4_i32 dim 0 : vector<32x32xf32>, i32 -> vector<32x32xf32>
    %c28_i32 = arith.constant 28 : i32
    %79 = tpu.dynamic_rotate %77 by %c28_i32 dim 0 : vector<32x32xf32>, i32 -> vector<32x32xf32>
    %c0_i32_30 = arith.constant 0 : i32
    %80 = vector.broadcast %c0_i32_30 : i32 to vector<32x1xi32>
    %81 = arith.cmpi eq, %16, %80 : vector<32x1xi32>
    %cst_31 = arith.constant 0.000000e+00 : f32
    %82 = vector.shape_cast %81 : vector<32x1xi1> to vector<32x1xi1>
    %83 = vector.broadcast %82 : vector<32x1xi1> to vector<32x32xi1>
    %84 = vector.broadcast %cst_31 : f32 to vector<32x32xf32>
    %85 = arith.select %83, %84, %78 : vector<32x32xi1>, vector<32x32xf32>
    %c12_i32 = arith.constant 12 : i32
    %86 = vector.broadcast %c12_i32 : i32 to vector<32x1xi32>
    %87 = arith.cmpi eq, %16, %86 : vector<32x1xi32>
    %cst_32 = arith.constant 0.000000e+00 : f32
    %88 = vector.shape_cast %87 : vector<32x1xi1> to vector<32x1xi1>
    %89 = vector.broadcast %88 : vector<32x1xi1> to vector<32x32xi1>
    %90 = vector.broadcast %cst_32 : f32 to vector<32x32xf32>
    %91 = arith.select %89, %90, %79 : vector<32x32xi1>, vector<32x32xf32>
    %92 = tpu.concatenate %85, %77, %91 in 1 : vector<32x32xf32>, vector<32x32xf32>, vector<32x32xf32> -> vector<32x96xf32>
    %93 = arith.truncf %92 : vector<32x96xf32> to vector<32x96xbf16>
    %c0_33 = arith.constant 0 : index
    %c0_34 = arith.constant 0 : index
    %94 = vector.load %arg8[%c0_33, %c0_34] : memref<96x32xbf16, #tpu.memory_space<vmem>>, vector<96x32xbf16>
    %cst_35 = arith.constant dense<0.000000e+00> : vector<32x32xf32>
    %95 = tpu.matmul %93, %94, %cst_35 {dimension_numbers = #tpu.dot_dimension_numbers<[1], [0], [0], [1], [0, 0, 1, 1], [], []>} : vector<32x96xbf16>, vector<96x32xbf16>, vector<32x32xf32> -> vector<32x32xf32>
    %c0_36 = arith.constant 0 : index
    %c0_37 = arith.constant 0 : index
    %96 = vector.load %arg9[%c0_36, %c0_37] : memref<1x32xf32, #tpu.memory_space<vmem>>, vector<1x32xf32>
    %97 = vector.broadcast %96 : vector<1x32xf32> to vector<32x32xf32>
    %98 = arith.mulf %95, %97 : vector<32x32xf32>
    %c0_38 = arith.constant 0 : index
    %c0_39 = arith.constant 0 : index
    %99 = vector.load %arg10[%c0_38, %c0_39] : memref<1x32xf32, #tpu.memory_space<vmem>>, vector<1x32xf32>
    %100 = vector.broadcast %99 : vector<1x32xf32> to vector<32x32xf32>
    %101 = arith.addf %98, %100 : vector<32x32xf32>
    %cst_40 = arith.constant 0.000000e+00 : f32
    %102 = vector.broadcast %cst_40 : f32 to vector<32x32xf32>
    %103 = arith.maximumf %101, %102 : vector<32x32xf32>
    %c0_41 = arith.constant 0 : index
    %c0_42 = arith.constant 0 : index
    %104 = vector.load %arg1[%c0_41, %c0_42] : memref<2x32xf32, #tpu.memory_space<vmem>>, vector<2x32xf32>
    %cst_43 = arith.constant dense<0.000000e+00> : vector<2x32xf32>
    %105 = tpu.matmul %104, %103, %cst_43 {dimension_numbers = #tpu.dot_dimension_numbers<[1], [0], [0], [1], [0, 0, 1, 1], [], []>} : vector<2x32xf32>, vector<32x32xf32>, vector<2x32xf32> -> vector<2x32xf32>
    %c0_44 = arith.constant 0 : index
    %c0_45 = arith.constant 0 : index
    %106 = vector.load %arg11[%c0_44, %c0_45] : memref<32x16xf32, #tpu.memory_space<vmem>>, vector<32x16xf32>
    %cst_46 = arith.constant dense<0.000000e+00> : vector<2x16xf32>
    %107 = tpu.matmul %105, %106, %cst_46 {dimension_numbers = #tpu.dot_dimension_numbers<[1], [0], [0], [1], [0, 0, 1, 1], [], []>} : vector<2x32xf32>, vector<32x16xf32>, vector<2x16xf32> -> vector<2x16xf32>
    %cst_47 = arith.constant 0.000000e+00 : f32
    %108 = vector.broadcast %cst_47 : f32 to vector<2x16xf32>
    %109 = arith.cmpf ogt, %107, %108 : vector<2x16xf32>
    %cst_48 = arith.constant 0.00999999977 : f32
    %110 = vector.broadcast %cst_48 : f32 to vector<2x16xf32>
    %111 = arith.mulf %110, %107 : vector<2x16xf32>
    %112 = arith.select %109, %107, %111 : vector<2x16xi1>, vector<2x16xf32>
    %c0_49 = arith.constant 0 : index
    %c0_50 = arith.constant 0 : index
    %113 = vector.load %arg12[%c0_49, %c0_50] : memref<16x32xf32, #tpu.memory_space<vmem>>, vector<16x32xf32>
    %cst_51 = arith.constant dense<0.000000e+00> : vector<2x32xf32>
    %114 = tpu.matmul %112, %113, %cst_51 {dimension_numbers = #tpu.dot_dimension_numbers<[1], [0], [0], [1], [0, 0, 1, 1], [], []>} : vector<2x16xf32>, vector<16x32xf32>, vector<2x32xf32> -> vector<2x32xf32>
    %115 = arith.negf %114 : vector<2x32xf32>
    %116 = math.exp %115 : vector<2x32xf32>
    %cst_52 = arith.constant 1.000000e+00 : f32
    %117 = vector.broadcast %cst_52 : f32 to vector<2x32xf32>
    %118 = arith.addf %117, %116 : vector<2x32xf32>
    %119 = arith.divf %117, %118 : vector<2x32xf32>
    %120 = arith.mulf %105, %119 : vector<2x32xf32>
    %c0_53 = arith.constant 0 : index
    %c0_54 = arith.constant 0 : index
    %121 = vector.load %arg13[%c0_53, %c0_54] : memref<32x2xf32, #tpu.memory_space<vmem>>, vector<32x2xf32>
    %cst_55 = arith.constant dense<0.000000e+00> : vector<2x2xf32>
    %122 = tpu.matmul %120, %121, %cst_55 {dimension_numbers = #tpu.dot_dimension_numbers<[1], [0], [0], [1], [0, 0, 1, 1], [], []>} : vector<2x32xf32>, vector<32x2xf32>, vector<2x2xf32> -> vector<2x2xf32>
    %c0_56 = arith.constant 0 : index
    %c0_57 = arith.constant 0 : index
    %123 = vector.load %arg14[%c0_56, %c0_57] : memref<1x2xf32, #tpu.memory_space<vmem>>, vector<1x2xf32>
    %124 = vector.broadcast %123 : vector<1x2xf32> to vector<2x2xf32>
    %125 = arith.addf %122, %124 : vector<2x2xf32>
    %c0_58 = arith.constant 0 : index
    %c0_59 = arith.constant 0 : index
    %126 = vector.load %arg15[%c0_58, %c0_59] : memref<2x2xf32, #tpu.memory_space<vmem>>, vector<2x2xf32>
    tpu.vector_store %arg15[%c0_58, %c0_59], %125 {strides = array<i32>} : memref<2x2xf32, #tpu.memory_space<vmem>>, vector<2x2xf32>,
    return
  }
}

</mosaic_0001>

<llo_original>
// kernel: tpu_custom_call.1
$region0: #{tpu_custom_call.1}
  #allocation0 [shape = 'u32[]', space=smem, size = 0x4, offset = 0x4, fixed_abs, tag = 'smem constant byte address 0x4 - core index']
  #allocation1 [shape = 'u32[144,128]{1,0:T(1,128)}', space=vmem, size = 0x12000, scoped, tag = 'internal scratch']
  %s0 = inlined_call_operand.vmem [shape: f32[32,4], index: 0, kind: input, shape index: {}]
  %s1 = inlined_call_operand.vmem [shape: f32[2,32], index: 1, kind: input, shape index: {}]
  %s2 = inlined_call_operand.vmem [shape: bf16[12,32], index: 2, kind: input, shape index: {}]
  %s3 = inlined_call_operand.vmem [shape: f32[1,32], index: 3, kind: input, shape index: {}]
  %s4 = inlined_call_operand.vmem [shape: f32[1,32], index: 4, kind: input, shape index: {}]
  %s5 = inlined_call_operand.vmem [shape: bf16[96,32], index: 5, kind: input, shape index: {}]
  %s6 = inlined_call_operand.vmem [shape: f32[1,32], index: 6, kind: input, shape index: {}]
  %s7 = inlined_call_operand.vmem [shape: f32[1,32], index: 7, kind: input, shape index: {}]
  %s8 = inlined_call_operand.vmem [shape: bf16[96,32], index: 8, kind: input, shape index: {}]
  %s9 = inlined_call_operand.vmem [shape: f32[1,32], index: 9, kind: input, shape index: {}]
  %s10 = inlined_call_operand.vmem [shape: f32[1,32], index: 10, kind: input, shape index: {}]
  %s11 = inlined_call_operand.vmem [shape: f32[32,16], index: 11, kind: input, shape index: {}]
  %s12 = inlined_call_operand.vmem [shape: f32[16,32], index: 12, kind: input, shape index: {}]
  %s13 = inlined_call_operand.vmem [shape: f32[32,2], index: 13, kind: input, shape index: {}]
  %s14 = inlined_call_operand.vmem [shape: f32[1,2], index: 14, kind: input, shape index: {}]
  %s15 = inlined_call_operand.hbm [shape: f32[2,2], index: 15, kind: output, shape index: {}]
  %s16 = sld [smem:[#allocation0]]
  $region70: #{tpu_custom_call.1} parent=0
    _
  %s18 = ssub.s32 1, %s16
  %s19 = scalar_select 0, %s18, %s16
  $region1: #{tpu_custom_call.1} parent=0
    #allocation2 [shape = 'u8[1024]{0}', space=vmem, size = 0x400, scoped, tag = 'output window, operand 0, single buffered']
    #allocation3 [shape = 's32[1]{0}', space=sflag, size = 0x4, scoped, tag = 'scoped memory for tpu_custom_call.1']
    %20 = vsyncpa [#allocation3], 0
    // Predicated region
    $region2: #{tpu_custom_call.1} parent=1 // pred_check
      _
    $region3: #{tpu_custom_call.1} parent=1 // pred_check_branch
      %22 = sbr.rel (0) target = $region5
    $region4: #{tpu_custom_call.1} parent=1 // pred_region
      _
    $region5: #{tpu_custom_call.1} parent=1 // pred_fallthru
      _
    // Predicated region
    $region6: #{tpu_custom_call.1} parent=1 // pred_check
      _
    $region7: #{tpu_custom_call.1} parent=1 // pred_check_branch
      %24 = sbr.rel (0) target = $region9
    $region8: #{tpu_custom_call.1} parent=1 // pred_region
      _
    $region9: #{tpu_custom_call.1} parent=1 // pred_fallthru
      _
    // Predicated region
    $region10: #{tpu_custom_call.1} parent=1 // pred_check
      _
    $region11: #{tpu_custom_call.1} parent=1 // pred_check_branch
      %26 = sbr.rel (0) target = $region13
    $region12: #{tpu_custom_call.1} parent=1 // pred_region
      _
    $region13: #{tpu_custom_call.1} parent=1 // pred_fallthru
      _
    // Predicated region
    $region14: #{tpu_custom_call.1} parent=1 // pred_check
      _
    $region15: #{tpu_custom_call.1} parent=1 // pred_check_branch
      %28 = sbr.rel (0) target = $region17
    $region16: #{tpu_custom_call.1} parent=1 // pred_region
      _
    $region17: #{tpu_custom_call.1} parent=1 // pred_fallthru
      _
    // Predicated region
    $region18: #{tpu_custom_call.1} parent=1 // pred_check
      _
    $region19: #{tpu_custom_call.1} parent=1 // pred_check_branch
      %30 = sbr.rel (0) target = $region21
    $region20: #{tpu_custom_call.1} parent=1 // pred_region
      _
    $region21: #{tpu_custom_call.1} parent=1 // pred_fallthru
      _
    // Predicated region
    $region22: #{tpu_custom_call.1} parent=1 // pred_check
      _
    $region23: #{tpu_custom_call.1} parent=1 // pred_check_branch
      %32 = sbr.rel (0) target = $region25
    $region24: #{tpu_custom_call.1} parent=1 // pred_region
      _
    $region25: #{tpu_custom_call.1} parent=1 // pred_fallthru
      _
    // Predicated region
    $region26: #{tpu_custom_call.1} parent=1 // pred_check
      _
    $region27: #{tpu_custom_call.1} parent=1 // pred_check_branch
      %34 = sbr.rel (0) target = $region29
    $region28: #{tpu_custom_call.1} parent=1 // pred_region
      _
    $region29: #{tpu_custom_call.1} parent=1 // pred_fallthru
      _
    // Predicated region
    $region30: #{tpu_custom_call.1} parent=1 // pred_check
      _
    $region31: #{tpu_custom_call.1} parent=1 // pred_check_branch
      %36 = sbr.rel (0) target = $region33
    $region32: #{tpu_custom_call.1} parent=1 // pred_region
      _
    $region33: #{tpu_custom_call.1} parent=1 // pred_fallthru
      _
    // Predicated region
    $region34: #{tpu_custom_call.1} parent=1 // pred_check
      _
    $region35: #{tpu_custom_call.1} parent=1 // pred_check_branch
      %38 = sbr.rel (0) target = $region37
    $region36: #{tpu_custom_call.1} parent=1 // pred_region
      _
    $region37: #{tpu_custom_call.1} parent=1 // pred_fallthru
      _
    // Predicated region
    $region38: #{tpu_custom_call.1} parent=1 // pred_check
      _
    $region39: #{tpu_custom_call.1} parent=1 // pred_check_branch
      %40 = sbr.rel (0) target = $region41
    $region40: #{tpu_custom_call.1} parent=1 // pred_region
      _
    $region41: #{tpu_custom_call.1} parent=1 // pred_fallthru
      _
    // Predicated region
    $region42: #{tpu_custom_call.1} parent=1 // pred_check
      _
    $region43: #{tpu_custom_call.1} parent=1 // pred_check_branch
      %42 = sbr.rel (0) target = $region45
    $region44: #{tpu_custom_call.1} parent=1 // pred_region
      _
    $region45: #{tpu_custom_call.1} parent=1 // pred_fallthru
      _
    // Predicated region
    $region46: #{tpu_custom_call.1} parent=1 // pred_check
      _
    $region47: #{tpu_custom_call.1} parent=1 // pred_check_branch
      %44 = sbr.rel (0) target = $region49
    $region48: #{tpu_custom_call.1} parent=1 // pred_region
      _
    $region49: #{tpu_custom_call.1} parent=1 // pred_fallthru
      _
    // Predicated region
    $region50: #{tpu_custom_call.1} parent=1 // pred_check
      _
    $region51: #{tpu_custom_call.1} parent=1 // pred_check_branch
      %46 = sbr.rel (0) target = $region53
    $region52: #{tpu_custom_call.1} parent=1 // pred_region
      _
    $region53: #{tpu_custom_call.1} parent=1 // pred_fallthru
      _
    // Predicated region
    $region54: #{tpu_custom_call.1} parent=1 // pred_check
      _
    $region55: #{tpu_custom_call.1} parent=1 // pred_check_branch
      %48 = sbr.rel (0) target = $region57
    $region56: #{tpu_custom_call.1} parent=1 // pred_region
      _
    $region57: #{tpu_custom_call.1} parent=1 // pred_fallthru
      _
    // Predicated region
    $region58: #{tpu_custom_call.1} parent=1 // pred_check
      _
    $region59: #{tpu_custom_call.1} parent=1 // pred_check_branch
      %50 = sbr.rel (0) target = $region61
    $region60: #{tpu_custom_call.1} parent=1 // pred_region
      _
    $region61: #{tpu_custom_call.1} parent=1 // pred_fallthru
      _
    %v52 = vlaneseq
    %v53 = vshrl.u32 %v52, 7
    %v54 = vadd.s32 %v53, 8
    %v55 = vadd.s32 %v53, 16
    %v56 = vadd.s32 %v53, 24
    %vm57 = vcmp.lt.s32.totalorder %v53, 0
    %v58 = vsub.s32 0, %v53
    %v59 = vsel %vm57, %v58, %v53
    %v60 = vshrl.u32 %v59, 4
    %v61 = vand.u32 %v59, 15
    %v62 = vsub.s32 0, %v61
    %v63 = vsel %vm57, %v62, %v61
    %vm64 = vcmp.lt.s32.totalorder %v54, 0
    %v65 = vsub.s32 0, %v54
    %v66 = vsel %vm64, %v65, %v54
    %v67 = vshrl.u32 %v66, 4
    %v68 = vand.u32 %v66, 15
    %v69 = vsub.s32 0, %v68
    %v70 = vsel %vm64, %v69, %v68
    %vm71 = vcmp.lt.s32.totalorder %v55, 0
    %v72 = vsub.s32 0, %v55
    %v73 = vsel %vm71, %v72, %v55
    %v74 = vshrl.u32 %v73, 4
    %v75 = vand.u32 %v73, 15
    %v76 = vsub.s32 0, %v75
    %v77 = vsel %vm71, %v76, %v75
    %vm78 = vcmp.lt.s32.totalorder %v56, 0
    %v79 = vsub.s32 0, %v56
    %v80 = vsel %vm78, %v79, %v56
    %v81 = vshrl.u32 %v80, 4
    %v82 = vand.u32 %v80, 15
    %v83 = vsub.s32 0, %v82
    %v84 = vsel %vm78, %v83, %v82
    %vm85 = vcmp.ne.s32.totalorder %v63, 0
    %vm86 = vcmp.ne.s32.totalorder %v70, 0
    %vm87 = vcmp.ne.s32.totalorder %v77, 0
    %vm88 = vcmp.ne.s32.totalorder %v84, 0
    %vm89 = vcmp.lt.s32.totalorder %v63, 0
    %vm90 = vcmp.lt.s32.totalorder %v70, 0
    %vm91 = vcmp.lt.s32.totalorder %v77, 0
    %vm92 = vcmp.lt.s32.totalorder %v84, 0
    %vm93 = vmand %vm89, %vm85
    %vm94 = vmand %vm90, %vm86
    %vm95 = vmand %vm91, %vm87
    %vm96 = vmand %vm92, %vm88
    %v97 = vadd.s32 %v63, 16
    %v98 = vadd.s32 %v70, 16
    %v99 = vadd.s32 %v77, 16
    %v100 = vadd.s32 %v84, 16
    %v101 = vsel %vm93, %v97, %v63
    %v102 = vsel %vm94, %v98, %v70
    %v103 = vsel %vm95, %v99, %v77
    %v104 = vsel %vm96, %v100, %v84
    %v105 = vld [vmem:[%s0] sm:$0xff]
    %v106 = vld [vmem:[%s0 + $0x8] sm:$0xff]
    %v107 = vld [vmem:[%s0 + $0x10] sm:$0xff]
    %v108 = vld [vmem:[%s0 + $0x18] sm:$0xff]
    %v109 = vrot.slane %v105, 7
    %v110 = vrot.slane %v106, 7
    %v111 = vrot.slane %v107, 7
    %v112 = vrot.slane %v108, 7
    %vm113 = vcmp.lt.s32.totalorder %v53, 1
    %v114 = vsel %vm113, %v111, %v112
    %v115 = vsel %vm113, %v110, %v111
    %v116 = vsel %vm113, %v109, %v110
    %v117 = vsel %vm113, %v112, %v109
    %v118 = vrot.slane %v105, 1
    %v119 = vrot.slane %v106, 1
    %v120 = vrot.slane %v107, 1
    %v121 = vrot.slane %v108, 1
    %vm122 = vcmp.lt.s32.totalorder %v53, 7
    %v123 = vsel %vm122, %v120, %v121
    %v124 = vsel %vm122, %v119, %v120
    %v125 = vsel %vm122, %v118, %v119
    %v126 = vsel %vm122, %v121, %v118
    %vm127 = vcmp.eq.s32.totalorder %v101, 0
    %vm128 = vcmp.eq.s32.totalorder %v102, 0
    %vm129 = vcmp.eq.s32.totalorder %v103, 0
    %vm130 = vcmp.eq.s32.totalorder %v104, 0
    %v131 = vsel %vm127, 1, 0
    %v132 = vsel %vm128, 1, 0
    %v133 = vsel %vm129, 1, 0
    %v134 = vsel %vm130, 1, 0
    %vm135 = vcmp.eq.s32.totalorder %v131, 1
    %vm136 = vcmp.eq.s32.totalorder %v132, 1
    %vm137 = vcmp.eq.s32.totalorder %v133, 1
    %vm138 = vcmp.eq.s32.totalorder %v134, 1
    %v139 = vsel %vm135, 0.0, %v117
    %v140 = vsel %vm136, 0.0, %v116
    %v141 = vsel %vm137, 0.0, %v115
    %v142 = vsel %vm138, 0.0, %v114
    %vm143 = vcmp.eq.s32.totalorder %v101, 15
    %vm144 = vcmp.eq.s32.totalorder %v102, 15
    %vm145 = vcmp.eq.s32.totalorder %v103, 15
    %vm146 = vcmp.eq.s32.totalorder %v104, 15
    %v147 = vsel %vm143, 1, 0
    %v148 = vsel %vm144, 1, 0
    %v149 = vsel %vm145, 1, 0
    %v150 = vsel %vm146, 1, 0
    %vm151 = vcmp.eq.s32.totalorder %v147, 1
    %vm152 = vcmp.eq.s32.totalorder %v148, 1
    %vm153 = vcmp.eq.s32.totalorder %v149, 1
    %vm154 = vcmp.eq.s32.totalorder %v150, 1
    %v155 = vsel %vm151, 0.0, %v125
    %v156 = vsel %vm152, 0.0, %v124
    %v157 = vsel %vm153, 0.0, %v123
    %v158 = vsel %vm154, 0.0, %v126
    %163 = vrot.lane.b32.xlu0 %v105, 4
    %v164 = vpop.permute.xlu0 %163
    %165 = vrot.lane.b32.xlu0 %v106, 4
    %v166 = vpop.permute.xlu0 %165
    %167 = vrot.lane.b32.xlu0 %v107, 4
    %v168 = vpop.permute.xlu0 %167
    %169 = vrot.lane.b32.xlu0 %v108, 4
    %v170 = vpop.permute.xlu0 %169
    %179 = vrot.lane.b32.xlu0 %v155, 8
    %v180 = vpop.permute.xlu0 %179
    %181 = vrot.lane.b32.xlu0 %v156, 8
    %v182 = vpop.permute.xlu0 %181
    %183 = vrot.lane.b32.xlu0 %v157, 8
    %v184 = vpop.permute.xlu0 %183
    %185 = vrot.lane.b32.xlu0 %v158, 8
    %v186 = vpop.permute.xlu0 %185
    %vm191 = vcmask 31744
    %v192 = vsel %vm191, %v139, %v164
    %v193 = vsel %vm191, %v140, %v166
    %v194 = vsel %vm191, %v141, %v168
    %v195 = vsel %vm191, %v142, %v170
    %vm196 = vcmask 64512
    %v197 = vsel %vm196, %v192, %v180
    %v198 = vsel %vm196, %v193, %v182
    %v199 = vsel %vm196, %v194, %v184
    %v200 = vsel %vm196, %v195, %v186
    %v201 = vpack.c.bf16 %v198, %v197
    %v202 = vpack.c.bf16 %v200, %v199
    %v203 = vld [vmem:[%s2] sm:$0xf]
    %v204 = vld [vmem:[%s2 + $0x4] sm:$0x3]
    %v207 = vunpack.c.l.b16 %v203
    %v208 = vunpack.c.l.b16 %v204
    %v209 = vpack.c.b16 %v208, %v207
    %vm210 = vcmask 97280
    %v212 = vsel %vm210, %v201, 0
    %v215 = vsel %vm210, %v202, 0
    %vm217 = vcmask 1045504
    %v219 = vsel %vm217, %v209, 0
    %221 = vmatprep.subr.bf16.mxu0 0
    %222 = vmatpush1.bf16.msra.mxu0 0
    %223 = vmatprep.subr.bf16.mxu0 0
    %224 = vmatpush1.bf16.msra.mxu0 0
    %225 = vmatprep.subr.bf16.mxu0 0
    %226 = vmatpush1.bf16.msra.mxu0 0
    %227 = vmatprep.subr.bf16.mxu0 0
    %228 = vmatpush1.bf16.msra.mxu0 0
    %229 = vmatprep.subr.bf16.mxu0 0
    %230 = vmatpush1.bf16.msra.mxu0 0
    %231 = vmatprep.subr.bf16.mxu0 0
    %232 = vmatpush1.bf16.msra.mxu0 0
    %233 = vmatprep.subr.bf16.mxu0 0
    %234 = vmatpush1.bf16.msra.mxu0 0
    %235 = vmatprep.subr.bf16.mxu0 0
    %236 = vmatpush1.bf16.msra.mxu0 %v219
    %237 = vmatprep.subr.bf16.mxu0 0
    %238 = vmatpush2.bf16.msra.mxu0 0
    %239 = vmatprep.subr.bf16.mxu0 0
    %240 = vmatpush2.bf16.msra.mxu0 0
    %241 = vmatprep.subr.bf16.mxu0 0
    %242 = vmatpush2.bf16.msra.mxu0 0
    %243 = vmatprep.subr.bf16.mxu0 0
    %244 = vmatpush2.bf16.msra.mxu0 0
    %245 = vmatprep.subr.bf16.mxu0 0
    %246 = vmatpush2.bf16.msra.mxu0 0
    %247 = vmatprep.subr.bf16.mxu0 0
    %248 = vmatpush2.bf16.msra.mxu0 0
    %249 = vmatprep.subr.bf16.mxu0 0
    %250 = vmatpush2.bf16.msra.mxu0 0
    %251 = vmatprep.subr.bf16.mxu0 0
    %252 = vmatpush2.bf16.msra.mxu0 0
    %253 = vmatprep.mubr.bf16.mxu0 0
    %254 = vmatmul.mubr.bf16.gmra.mxu0 %v212
    %v255 = vpop.f32.mrf.mxu0
    %v256 = vadd.f32 0.0, %v255
    %v257 = vpop.f32.mrf.mxu0
    %v258 = vpop.f32.mrf.mxu0
    %v259 = vadd.f32 0.0, %v258
    %v260 = vpop.f32.mrf.mxu0
    %261 = vmatprep.mubr.bf16.mxu0 0
    %262 = vmatmul.mubr.bf16.gmra.mxu0 %v215
    %v263 = vpop.f32.mrf.mxu0
    %v264 = vadd.f32 0.0, %v263
    %v265 = vpop.f32.mrf.mxu0
    %v266 = vpop.f32.mrf.mxu0
    %v267 = vadd.f32 0.0, %v266
    %v268 = vpop.f32.mrf.mxu0
    %269 = vdwg.mxu0
    %v270 = vld [vmem:[%s3] sm:$0x1]
    %v272 = vlaneseq
    %v273 = vshrl.u32 %v272, 7
    %v274 = vsub.s32 0, %v273
    %v275 = vrot.slane %v270, %v274
    %v277 = vmul.f32 %v256, %v275
    %v278 = vmul.f32 %v259, %v275
    %v279 = vmul.f32 %v264, %v275
    %v280 = vmul.f32 %v267, %v275
    %v281 = vld [vmem:[%s4] sm:$0x1]
    %v283 = vlaneseq
    %v284 = vshrl.u32 %v283, 7
    %v285 = vsub.s32 0, %v284
    %v286 = vrot.slane %v281, %v285
    %v288 = vadd.f32 %v277, %v286
    %v289 = vadd.f32 %v278, %v286
    %v290 = vadd.f32 %v279, %v286
    %v291 = vadd.f32 %v280, %v286
    %v292 = vmax.f32 %v288, 0.0
    %v293 = vmax.f32 %v289, 0.0
    %v294 = vmax.f32 %v290, 0.0
    %v295 = vmax.f32 %v291, 0.0
    %v296 = vrot.slane %v292, 1
    %v297 = vrot.slane %v293, 1
    %v298 = vrot.slane %v294, 1
    %v299 = vrot.slane %v295, 1
    %v300 = vsel %vm122, %v298, %v299
    %v301 = vsel %vm122, %v297, %v298
    %v302 = vsel %vm122, %v296, %v297
    %v303 = vsel %vm122, %v299, %v296
    %v304 = vadd.f32 %v292, %v302
    %v305 = vadd.f32 %v293, %v301
    %v306 = vadd.f32 %v294, %v300
    %v307 = vadd.f32 %v295, %v303
    %v308 = vmul.f32 %v304, 0.5
    %v309 = vmul.f32 %v305, 0.5
    %v310 = vmul.f32 %v306, 0.5
    %v311 = vmul.f32 %v307, 0.5
    %v312 = vrot.slane %v308, 6
    %v313 = vrot.slane %v309, 6
    %v314 = vrot.slane %v310, 6
    %v315 = vrot.slane %v311, 6
    %vm316 = vcmp.lt.s32.totalorder %v53, 2
    %v317 = vsel %vm316, %v314, %v315
    %v318 = vsel %vm316, %v313, %v314
    %v319 = vsel %vm316, %v312, %v313
    %v320 = vsel %vm316, %v315, %v312
    %v321 = vrot.slane %v308, 2
    %v322 = vrot.slane %v309, 2
    %v323 = vrot.slane %v310, 2
    %v324 = vrot.slane %v311, 2
    %vm325 = vcmp.lt.s32.totalorder %v53, 6
    %v326 = vsel %vm325, %v323, %v324
    %v327 = vsel %vm325, %v322, %v323
    %v328 = vsel %vm325, %v321, %v322
    %v329 = vsel %vm325, %v324, %v321
    %v330 = vsel %vm135, 0.0, %v320
    %v331 = vsel %vm136, 0.0, %v319
    %v332 = vsel %vm137, 0.0, %v318
    %v333 = vsel %vm138, 0.0, %v317
    %vm334 = vcmp.eq.s32.totalorder %v101, 14
    %vm335 = vcmp.eq.s32.totalorder %v102, 14
    %vm336 = vcmp.eq.s32.totalorder %v103, 14
    %vm337 = vcmp.eq.s32.totalorder %v104, 14
    %v338 = vsel %vm334, 1, 0
    %v339 = vsel %vm335, 1, 0
    %v340 = vsel %vm336, 1, 0
    %v341 = vsel %vm337, 1, 0
    %vm342 = vcmp.eq.s32.totalorder %v338, 1
    %vm343 = vcmp.eq.s32.totalorder %v339, 1
    %vm344 = vcmp.eq.s32.totalorder %v340, 1
    %vm345 = vcmp.eq.s32.totalorder %v341, 1
    %v346 = vsel %vm342, 0.0, %v328
    %v347 = vsel %vm343, 0.0, %v327
    %v348 = vsel %vm344, 0.0, %v326
    %v349 = vsel %vm345, 0.0, %v329
    %354 = vrot.lane.b32.xlu0 %v308, 32
    %v355 = vpop.permute.xlu0 %354
    %356 = vrot.lane.b32.xlu0 %v309, 32
    %v357 = vpop.permute.xlu0 %356
    %358 = vrot.lane.b32.xlu0 %v310, 32
    %v359 = vpop.permute.xlu0 %358
    %360 = vrot.lane.b32.xlu0 %v311, 32
    %v361 = vpop.permute.xlu0 %360
    %370 = vrot.lane.b32.xlu0 %v346, 64
    %v371 = vpop.permute.xlu0 %370
    %372 = vrot.lane.b32.xlu0 %v347, 64
    %v373 = vpop.permute.xlu0 %372
    %374 = vrot.lane.b32.xlu0 %v348, 64
    %v375 = vpop.permute.xlu0 %374
    %376 = vrot.lane.b32.xlu0 %v349, 64
    %v377 = vpop.permute.xlu0 %376
    %vm382 = vcmask 261120
    %v383 = vsel %vm382, %v330, %v355
    %v384 = vsel %vm382, %v331, %v357
    %v385 = vsel %vm382, %v332, %v359
    %v386 = vsel %vm382, %v333, %v361
    %vm387 = vcmask 523264
    %v388 = vsel %vm387, %v383, %v371
    %v389 = vsel %vm387, %v384, %v373
    %v390 = vsel %vm387, %v385, %v375
    %v391 = vsel %vm387, %v386, %v377
    %v392 = vpack.c.bf16 %v389, %v388
    %v393 = vpack.c.bf16 %v391, %v390
    %v394 = vld [vmem:[%s5] sm:$0xf]
    %v395 = vld [vmem:[%s5 + $0x4] sm:$0xf]
    %v396 = vld [vmem:[%s5 + $0x8] sm:$0xf]
    %v397 = vld [vmem:[%s5 + $0xc] sm:$0xf]
    %v398 = vld [vmem:[%s5 + $0x10] sm:$0xf]
    %v399 = vld [vmem:[%s5 + $0x14] sm:$0xf]
    %v400 = vld [vmem:[%s5 + $0x18] sm:$0xf]
    %v401 = vld [vmem:[%s5 + $0x1c] sm:$0xf]
    %v402 = vld [vmem:[%s5 + $0x20] sm:$0xf]
    %v403 = vld [vmem:[%s5 + $0x24] sm:$0xf]
    %v404 = vld [vmem:[%s5 + $0x28] sm:$0xf]
    %v405 = vld [vmem:[%s5 + $0x2c] sm:$0xf]
    %v418 = vunpack.c.l.b16 %v394
    %v419 = vunpack.c.l.b16 %v395
    %v420 = vunpack.c.l.b16 %v396
    %v421 = vunpack.c.l.b16 %v397
    %v422 = vunpack.c.l.b16 %v398
    %v423 = vunpack.c.l.b16 %v399
    %v424 = vunpack.c.l.b16 %v400
    %v425 = vunpack.c.l.b16 %v401
    %v426 = vunpack.c.l.b16 %v402
    %v427 = vunpack.c.l.b16 %v403
    %v428 = vunpack.c.l.b16 %v404
    %v429 = vunpack.c.l.b16 %v405
    %v430 = vpack.c.b16 %v419, %v418
    %v431 = vpack.c.b16 %v421, %v420
    %v432 = vpack.c.b16 %v423, %v422
    %v433 = vpack.c.b16 %v425, %v424
    %v434 = vpack.c.b16 %v427, %v426
    %v435 = vpack.c.b16 %v429, %v428
    %vm442 = vcmask 785408
    %v444 = vsel %vm442, %v392, 0
    %v447 = vsel %vm442, %v393, 0
    %449 = vmatprep.subr.bf16.mxu0 0
    %450 = vmatpush1.bf16.msra.mxu0 0
    %451 = vmatprep.subr.bf16.mxu0 0
    %452 = vmatpush1.bf16.msra.mxu0 0
    %453 = vmatprep.subr.bf16.mxu0 0
    %454 = vmatpush1.bf16.msra.mxu0 %v435
    %455 = vmatprep.subr.bf16.mxu0 0
    %456 = vmatpush1.bf16.msra.mxu0 %v434
    %457 = vmatprep.subr.bf16.mxu0 0
    %458 = vmatpush1.bf16.msra.mxu0 %v433
    %459 = vmatprep.subr.bf16.mxu0 0
    %460 = vmatpush1.bf16.msra.mxu0 %v432
    %461 = vmatprep.subr.bf16.mxu0 0
    %462 = vmatpush1.bf16.msra.mxu0 %v431
    %463 = vmatprep.subr.bf16.mxu0 0
    %464 = vmatpush1.bf16.msra.mxu0 %v430
    %465 = vmatprep.subr.bf16.mxu0 0
    %466 = vmatpush2.bf16.msra.mxu0 0
    %467 = vmatprep.subr.bf16.mxu0 0
    %468 = vmatpush2.bf16.msra.mxu0 0
    %469 = vmatprep.subr.bf16.mxu0 0
    %470 = vmatpush2.bf16.msra.mxu0 0
    %471 = vmatprep.subr.bf16.mxu0 0
    %472 = vmatpush2.bf16.msra.mxu0 0
    %473 = vmatprep.subr.bf16.mxu0 0
    %474 = vmatpush2.bf16.msra.mxu0 0
    %475 = vmatprep.subr.bf16.mxu0 0
    %476 = vmatpush2.bf16.msra.mxu0 0
    %477 = vmatprep.subr.bf16.mxu0 0
    %478 = vmatpush2.bf16.msra.mxu0 0
    %479 = vmatprep.subr.bf16.mxu0 0
    %480 = vmatpush2.bf16.msra.mxu0 0
    %481 = vmatprep.mubr.bf16.mxu0 0
    %482 = vmatmul.mubr.bf16.gmra.mxu0 %v444
    %v483 = vpop.f32.mrf.mxu0
    %v484 = vadd.f32 0.0, %v483
    %v485 = vpop.f32.mrf.mxu0
    %v486 = vpop.f32.mrf.mxu0
    %v487 = vadd.f32 0.0, %v486
    %v488 = vpop.f32.mrf.mxu0
    %489 = vmatprep.mubr.bf16.mxu0 0
    %490 = vmatmul.mubr.bf16.gmra.mxu0 %v447
    %v491 = vpop.f32.mrf.mxu0
    %v492 = vadd.f32 0.0, %v491
    %v493 = vpop.f32.mrf.mxu0
    %v494 = vpop.f32.mrf.mxu0
    %v495 = vadd.f32 0.0, %v494
    %v496 = vpop.f32.mrf.mxu0
    %497 = vdwg.mxu0
    %v498 = vld [vmem:[%s6] sm:$0x1]
    %v500 = vlaneseq
    %v501 = vshrl.u32 %v500, 7
    %v502 = vsub.s32 0, %v501
    %v503 = vrot.slane %v498, %v502
    %v505 = vmul.f32 %v484, %v503
    %v506 = vmul.f32 %v487, %v503
    %v507 = vmul.f32 %v492, %v503
    %v508 = vmul.f32 %v495, %v503
    %v509 = vld [vmem:[%s7] sm:$0x1]
    %v511 = vlaneseq
    %v512 = vshrl.u32 %v511, 7
    %v513 = vsub.s32 0, %v512
    %v514 = vrot.slane %v509, %v513
    %v516 = vadd.f32 %v505, %v514
    %v517 = vadd.f32 %v506, %v514
    %v518 = vadd.f32 %v507, %v514
    %v519 = vadd.f32 %v508, %v514
    %v520 = vmax.f32 %v516, 0.0
    %v521 = vmax.f32 %v517, 0.0
    %v522 = vmax.f32 %v518, 0.0
    %v523 = vmax.f32 %v519, 0.0
    %v524 = vrot.slane %v520, 2
    %v525 = vrot.slane %v521, 2
    %v526 = vrot.slane %v522, 2
    %v527 = vrot.slane %v523, 2
    %v528 = vsel %vm325, %v526, %v527
    %v529 = vsel %vm325, %v525, %v526
    %v530 = vsel %vm325, %v524, %v525
    %v531 = vsel %vm325, %v527, %v524
    %v532 = vadd.f32 %v520, %v530
    %v533 = vadd.f32 %v521, %v529
    %v534 = vadd.f32 %v522, %v528
    %v535 = vadd.f32 %v523, %v531
    %v536 = vmul.f32 %v532, 0.5
    %v537 = vmul.f32 %v533, 0.5
    %v538 = vmul.f32 %v534, 0.5
    %v539 = vmul.f32 %v535, 0.5
    %v540 = vrot.slane %v536, 4
    %v541 = vrot.slane %v537, 4
    %v542 = vrot.slane %v538, 4
    %v543 = vrot.slane %v539, 4
    %vm544 = vcmp.lt.s32.totalorder %v53, 4
    %v545 = vsel %vm544, %v542, %v543
    %v546 = vsel %vm544, %v541, %v542
    %v547 = vsel %vm544, %v540, %v541
    %v548 = vsel %vm544, %v543, %v540
    %v549 = vsel %vm135, 0.0, %v548
    %v550 = vsel %vm136, 0.0, %v547
    %v551 = vsel %vm137, 0.0, %v546
    %v552 = vsel %vm138, 0.0, %v545
    %vm553 = vcmp.eq.s32.totalorder %v101, 12
    %vm554 = vcmp.eq.s32.totalorder %v102, 12
    %vm555 = vcmp.eq.s32.totalorder %v103, 12
    %vm556 = vcmp.eq.s32.totalorder %v104, 12
    %v557 = vsel %vm553, 1, 0
    %v558 = vsel %vm554, 1, 0
    %v559 = vsel %vm555, 1, 0
    %v560 = vsel %vm556, 1, 0
    %vm561 = vcmp.eq.s32.totalorder %v557, 1
    %vm562 = vcmp.eq.s32.totalorder %v558, 1
    %vm563 = vcmp.eq.s32.totalorder %v559, 1
    %vm564 = vcmp.eq.s32.totalorder %v560, 1
    %v565 = vsel %vm561, 0.0, %v547
    %v566 = vsel %vm562, 0.0, %v546
    %v567 = vsel %vm563, 0.0, %v545
    %v568 = vsel %vm564, 0.0, %v548
    %573 = vrot.lane.b32.xlu0 %v536, 32
    %v574 = vpop.permute.xlu0 %573
    %575 = vrot.lane.b32.xlu0 %v537, 32
    %v576 = vpop.permute.xlu0 %575
    %577 = vrot.lane.b32.xlu0 %v538, 32
    %v578 = vpop.permute.xlu0 %577
    %579 = vrot.lane.b32.xlu0 %v539, 32
    %v580 = vpop.permute.xlu0 %579
    %589 = vrot.lane.b32.xlu0 %v565, 64
    %v590 = vpop.permute.xlu0 %589
    %591 = vrot.lane.b32.xlu0 %v566, 64
    %v592 = vpop.permute.xlu0 %591
    %593 = vrot.lane.b32.xlu0 %v567, 64
    %v594 = vpop.permute.xlu0 %593
    %595 = vrot.lane.b32.xlu0 %v568, 64
    %v596 = vpop.permute.xlu0 %595
    %v601 = vsel %vm382, %v549, %v574
    %v602 = vsel %vm382, %v550, %v576
    %v603 = vsel %vm382, %v551, %v578
    %v604 = vsel %vm382, %v552, %v580
    %v605 = vsel %vm387, %v601, %v590
    %v606 = vsel %vm387, %v602, %v592
    %v607 = vsel %vm387, %v603, %v594
    %v608 = vsel %vm387, %v604, %v596
    %v609 = vpack.c.bf16 %v606, %v605
    %v610 = vpack.c.bf16 %v608, %v607
    %v611 = vld [vmem:[%s8] sm:$0xf]
    %v612 = vld [vmem:[%s8 + $0x4] sm:$0xf]
    %v613 = vld [vmem:[%s8 + $0x8] sm:$0xf]
    %v614 = vld [vmem:[%s8 + $0xc] sm:$0xf]
    %v615 = vld [vmem:[%s8 + $0x10] sm:$0xf]
    %v616 = vld [vmem:[%s8 + $0x14] sm:$0xf]
    %v617 = vld [vmem:[%s8 + $0x18] sm:$0xf]
    %v618 = vld [vmem:[%s8 + $0x1c] sm:$0xf]
    %v619 = vld [vmem:[%s8 + $0x20] sm:$0xf]
    %v620 = vld [vmem:[%s8 + $0x24] sm:$0xf]
    %v621 = vld [vmem:[%s8 + $0x28] sm:$0xf]
    %v622 = vld [vmem:[%s8 + $0x2c] sm:$0xf]
    %v635 = vunpack.c.l.b16 %v611
    %v636 = vunpack.c.l.b16 %v612
    %v637 = vunpack.c.l.b16 %v613
    %v638 = vunpack.c.l.b16 %v614
    %v639 = vunpack.c.l.b16 %v615
    %v640 = vunpack.c.l.b16 %v616
    %v641 = vunpack.c.l.b16 %v617
    %v642 = vunpack.c.l.b16 %v618
    %v643 = vunpack.c.l.b16 %v619
    %v644 = vunpack.c.l.b16 %v620
    %v645 = vunpack.c.l.b16 %v621
    %v646 = vunpack.c.l.b16 %v622
    %v647 = vpack.c.b16 %v636, %v635
    %v648 = vpack.c.b16 %v638, %v637
    %v649 = vpack.c.b16 %v640, %v639
    %v650 = vpack.c.b16 %v642, %v641
    %v651 = vpack.c.b16 %v644, %v643
    %v652 = vpack.c.b16 %v646, %v645
    %v660 = vsel %vm442, %v609, 0
    %v663 = vsel %vm442, %v610, 0
    %665 = vmatprep.subr.bf16.mxu0 0
    %666 = vmatpush1.bf16.msra.mxu0 0
    %667 = vmatprep.subr.bf16.mxu0 0
    %668 = vmatpush1.bf16.msra.mxu0 0
    %669 = vmatprep.subr.bf16.mxu0 0
    %670 = vmatpush1.bf16.msra.mxu0 %v652
    %671 = vmatprep.subr.bf16.mxu0 0
    %672 = vmatpush1.bf16.msra.mxu0 %v651
    %673 = vmatprep.subr.bf16.mxu0 0
    %674 = vmatpush1.bf16.msra.mxu0 %v650
    %675 = vmatprep.subr.bf16.mxu0 0
    %676 = vmatpush1.bf16.msra.mxu0 %v649
    %677 = vmatprep.subr.bf16.mxu0 0
    %678 = vmatpush1.bf16.msra.mxu0 %v648
    %679 = vmatprep.subr.bf16.mxu0 0
    %680 = vmatpush1.bf16.msra.mxu0 %v647
    %681 = vmatprep.subr.bf16.mxu0 0
    %682 = vmatpush2.bf16.msra.mxu0 0
    %683 = vmatprep.subr.bf16.mxu0 0
    %684 = vmatpush2.bf16.msra.mxu0 0
    %685 = vmatprep.subr.bf16.mxu0 0
    %686 = vmatpush2.bf16.msra.mxu0 0
    %687 = vmatprep.subr.bf16.mxu0 0
    %688 = vmatpush2.bf16.msra.mxu0 0
    %689 = vmatprep.subr.bf16.mxu0 0
    %690 = vmatpush2.bf16.msra.mxu0 0
    %691 = vmatprep.subr.bf16.mxu0 0
    %692 = vmatpush2.bf16.msra.mxu0 0
    %693 = vmatprep.subr.bf16.mxu0 0
    %694 = vmatpush2.bf16.msra.mxu0 0
    %695 = vmatprep.subr.bf16.mxu0 0
    %696 = vmatpush2.bf16.msra.mxu0 0
    %697 = vmatprep.mubr.bf16.mxu0 0
    %698 = vmatmul.mubr.bf16.gmra.mxu0 %v660
    %v699 = vpop.f32.mrf.mxu0
    %v700 = vadd.f32 0.0, %v699
    %v701 = vpop.f32.mrf.mxu0
    %v702 = vpop.f32.mrf.mxu0
    %v703 = vadd.f32 0.0, %v702
    %v704 = vpop.f32.mrf.mxu0
    %705 = vmatprep.mubr.bf16.mxu0 0
    %706 = vmatmul.mubr.bf16.gmra.mxu0 %v663
    %v707 = vpop.f32.mrf.mxu0
    %v708 = vadd.f32 0.0, %v707
    %v709 = vpop.f32.mrf.mxu0
    %v710 = vpop.f32.mrf.mxu0
    %v711 = vadd.f32 0.0, %v710
    %v712 = vpop.f32.mrf.mxu0
    %713 = vdwg.mxu0
    %v714 = vld [vmem:[%s9] sm:$0x1]
    %v716 = vlaneseq
    %v717 = vshrl.u32 %v716, 7
    %v718 = vsub.s32 0, %v717
    %v719 = vrot.slane %v714, %v718
    %v721 = vmul.f32 %v700, %v719
    %v722 = vmul.f32 %v703, %v719
    %v723 = vmul.f32 %v708, %v719
    %v724 = vmul.f32 %v711, %v719
    %v725 = vld [vmem:[%s10] sm:$0x1]
    %v727 = vlaneseq
    %v728 = vshrl.u32 %v727, 7
    %v729 = vsub.s32 0, %v728
    %v730 = vrot.slane %v725, %v729
    %v732 = vadd.f32 %v721, %v730
    %v733 = vadd.f32 %v722, %v730
    %v734 = vadd.f32 %v723, %v730
    %v735 = vadd.f32 %v724, %v730
    %v736 = vmax.f32 %v732, 0.0
    %v737 = vmax.f32 %v733, 0.0
    %v738 = vmax.f32 %v734, 0.0
    %v739 = vmax.f32 %v735, 0.0
    %v740 = vld [vmem:[%s1] sm:$0x3]
    %v742 = vsel %vm382, %v740, 0
    %744 = vmatprep.subr.mxu0 0.0
    %745 = vmatpush1.msra.mxu0 0.0
    %746 = vmatprep.subr.mxu0 0.0
    %747 = vmatpush1.msra.mxu0 0.0
    %748 = vmatprep.subr.mxu0 0.0
    %749 = vmatpush1.msra.mxu0 0.0
    %750 = vmatprep.subr.mxu0 0.0
    %751 = vmatpush1.msra.mxu0 0.0
    %752 = vmatprep.subr.mxu0 0.0
    %753 = vmatpush1.msra.mxu0 0.0
    %754 = vmatprep.subr.mxu0 0.0
    %755 = vmatpush1.msra.mxu0 0.0
    %756 = vmatprep.subr.mxu0 0.0
    %757 = vmatpush1.msra.mxu0 0.0
    %758 = vmatprep.subr.mxu0 0.0
    %759 = vmatpush1.msra.mxu0 0.0
    %760 = vmatprep.subr.mxu0 0.0
    %761 = vmatpush1.msra.mxu0 0.0
    %762 = vmatprep.subr.mxu0 0.0
    %763 = vmatpush1.msra.mxu0 0.0
    %764 = vmatprep.subr.mxu0 0.0
    %765 = vmatpush1.msra.mxu0 0.0
    %766 = vmatprep.subr.mxu0 0.0
    %767 = vmatpush1.msra.mxu0 0.0
    %768 = vmatprep.subr.mxu0 0.0
    %769 = vmatpush1.msra.mxu0 %v739
    %770 = vmatprep.subr.mxu0 0.0
    %771 = vmatpush1.msra.mxu0 %v738
    %772 = vmatprep.subr.mxu0 0.0
    %773 = vmatpush1.msra.mxu0 %v737
    %774 = vmatprep.subr.mxu0 0.0
    %775 = vmatpush1.msra.mxu0 %v736
    %776 = vmatprep.subr.mxu0 0.0
    %777 = vmatpush2.msra.mxu0 0.0
    %778 = vmatprep.subr.mxu0 0.0
    %779 = vmatpush2.msra.mxu0 0.0
    %780 = vmatprep.subr.mxu0 0.0
    %781 = vmatpush2.msra.mxu0 0.0
    %782 = vmatprep.subr.mxu0 0.0
    %783 = vmatpush2.msra.mxu0 0.0
    %784 = vmatprep.subr.mxu0 0.0
    %785 = vmatpush2.msra.mxu0 0.0
    %786 = vmatprep.subr.mxu0 0.0
    %787 = vmatpush2.msra.mxu0 0.0
    %788 = vmatprep.subr.mxu0 0.0
    %789 = vmatpush2.msra.mxu0 0.0
    %790 = vmatprep.subr.mxu0 0.0
    %791 = vmatpush2.msra.mxu0 0.0
    %792 = vmatprep.subr.mxu0 0.0
    %793 = vmatpush2.msra.mxu0 0.0
    %794 = vmatprep.subr.mxu0 0.0
    %795 = vmatpush2.msra.mxu0 0.0
    %796 = vmatprep.subr.mxu0 0.0
    %797 = vmatpush2.msra.mxu0 0.0
    %798 = vmatprep.subr.mxu0 0.0
    %799 = vmatpush2.msra.mxu0 0.0
    %800 = vmatprep.subr.mxu0 0.0
    %801 = vmatpush2.msra.mxu0 0.0
    %802 = vmatprep.subr.mxu0 0.0
    %803 = vmatpush2.msra.mxu0 0.0
    %804 = vmatprep.subr.mxu0 0.0
    %805 = vmatpush2.msra.mxu0 0.0
    %806 = vmatprep.subr.mxu0 0.0
    %807 = vmatpush2.msra.mxu0 0.0
    %808 = vmatprep.mubr.f32.mxu0 0.0
    %809 = vmatmul.mubr.f32.gmra.mxu0 %v742
    %v810 = vpop.f32.mrf.mxu0
    %v811 = vadd.f32 0.0, %v810
    %v812 = vpop.f32.mrf.mxu0
    %813 = vdwg.mxu0
    %v814 = vld [vmem:[%s11] sm:$0xff]
    %v815 = vld [vmem:[%s11 + $0x8] sm:$0xff]
    %v816 = vld [vmem:[%s11 + $0x10] sm:$0xff]
    %v817 = vld [vmem:[%s11 + $0x18] sm:$0xff]
    %v819 = vsel %vm382, %v811, 0
    %821 = vmatprep.subr.mxu0 0.0
    %822 = vmatpush1.msra.mxu0 0.0
    %823 = vmatprep.subr.mxu0 0.0
    %824 = vmatpush1.msra.mxu0 0.0
    %825 = vmatprep.subr.mxu0 0.0
    %826 = vmatpush1.msra.mxu0 0.0
    %827 = vmatprep.subr.mxu0 0.0
    %828 = vmatpush1.msra.mxu0 0.0
    %829 = vmatprep.subr.mxu0 0.0
    %830 = vmatpush1.msra.mxu0 0.0
    %831 = vmatprep.subr.mxu0 0.0
    %832 = vmatpush1.msra.mxu0 0.0
    %833 = vmatprep.subr.mxu0 0.0
    %834 = vmatpush1.msra.mxu0 0.0
    %835 = vmatprep.subr.mxu0 0.0
    %836 = vmatpush1.msra.mxu0 0.0
    %837 = vmatprep.subr.mxu0 0.0
    %838 = vmatpush1.msra.mxu0 0.0
    %839 = vmatprep.subr.mxu0 0.0
    %840 = vmatpush1.msra.mxu0 0.0
    %841 = vmatprep.subr.mxu0 0.0
    %842 = vmatpush1.msra.mxu0 0.0
    %843 = vmatprep.subr.mxu0 0.0
    %844 = vmatpush1.msra.mxu0 0.0
    %845 = vmatprep.subr.mxu0 0.0
    %846 = vmatpush1.msra.mxu0 %v817
    %847 = vmatprep.subr.mxu0 0.0
    %848 = vmatpush1.msra.mxu0 %v816
    %849 = vmatprep.subr.mxu0 0.0
    %850 = vmatpush1.msra.mxu0 %v815
    %851 = vmatprep.subr.mxu0 0.0
    %852 = vmatpush1.msra.mxu0 %v814
    %853 = vmatprep.subr.mxu0 0.0
    %854 = vmatpush2.msra.mxu0 0.0
    %855 = vmatprep.subr.mxu0 0.0
    %856 = vmatpush2.msra.mxu0 0.0
    %857 = vmatprep.subr.mxu0 0.0
    %858 = vmatpush2.msra.mxu0 0.0
    %859 = vmatprep.subr.mxu0 0.0
    %860 = vmatpush2.msra.mxu0 0.0
    %861 = vmatprep.subr.mxu0 0.0
    %862 = vmatpush2.msra.mxu0 0.0
    %863 = vmatprep.subr.mxu0 0.0
    %864 = vmatpush2.msra.mxu0 0.0
    %865 = vmatprep.subr.mxu0 0.0
    %866 = vmatpush2.msra.mxu0 0.0
    %867 = vmatprep.subr.mxu0 0.0
    %868 = vmatpush2.msra.mxu0 0.0
    %869 = vmatprep.subr.mxu0 0.0
    %870 = vmatpush2.msra.mxu0 0.0
    %871 = vmatprep.subr.mxu0 0.0
    %872 = vmatpush2.msra.mxu0 0.0
    %873 = vmatprep.subr.mxu0 0.0
    %874 = vmatpush2.msra.mxu0 0.0
    %875 = vmatprep.subr.mxu0 0.0
    %876 = vmatpush2.msra.mxu0 0.0
    %877 = vmatprep.subr.mxu0 0.0
    %878 = vmatpush2.msra.mxu0 0.0
    %879 = vmatprep.subr.mxu0 0.0
    %880 = vmatpush2.msra.mxu0 0.0
    %881 = vmatprep.subr.mxu0 0.0
    %882 = vmatpush2.msra.mxu0 0.0
    %883 = vmatprep.subr.mxu0 0.0
    %884 = vmatpush2.msra.mxu0 0.0
    %885 = vmatprep.mubr.f32.mxu0 0.0
    %886 = vmatmul.mubr.f32.gmra.mxu0 %v819
    %v887 = vpop.f32.mrf.mxu0
    %v888 = vadd.f32 0.0, %v887
    %v889 = vpop.f32.mrf.mxu0
    %890 = vdwg.mxu0
    %vm891 = vcmp.gt.f32.partialorder %v888, 0.0
    %v892 = vmul.f32 %v888, 0.01
    %v893 = vsel %vm891, %v888, %v892
    %v894 = vld [vmem:[%s12] sm:$0xff]
    %v895 = vld [vmem:[%s12 + $0x8] sm:$0xff]
    %vm896 = vcmask 130048
    %v898 = vsel %vm896, %v893, 0
    %900 = vmatprep.subr.mxu0 0.0
    %901 = vmatpush1.msra.mxu0 0.0
    %902 = vmatprep.subr.mxu0 0.0
    %903 = vmatpush1.msra.mxu0 0.0
    %904 = vmatprep.subr.mxu0 0.0
    %905 = vmatpush1.msra.mxu0 0.0
    %906 = vmatprep.subr.mxu0 0.0
    %907 = vmatpush1.msra.mxu0 0.0
    %908 = vmatprep.subr.mxu0 0.0
    %909 = vmatpush1.msra.mxu0 0.0
    %910 = vmatprep.subr.mxu0 0.0
    %911 = vmatpush1.msra.mxu0 0.0
    %912 = vmatprep.subr.mxu0 0.0
    %913 = vmatpush1.msra.mxu0 0.0
    %914 = vmatprep.subr.mxu0 0.0
    %915 = vmatpush1.msra.mxu0 0.0
    %916 = vmatprep.subr.mxu0 0.0
    %917 = vmatpush1.msra.mxu0 0.0
    %918 = vmatprep.subr.mxu0 0.0
    %919 = vmatpush1.msra.mxu0 0.0
    %920 = vmatprep.subr.mxu0 0.0
    %921 = vmatpush1.msra.mxu0 0.0
    %922 = vmatprep.subr.mxu0 0.0
    %923 = vmatpush1.msra.mxu0 0.0
    %924 = vmatprep.subr.mxu0 0.0
    %925 = vmatpush1.msra.mxu0 0.0
    %926 = vmatprep.subr.mxu0 0.0
    %927 = vmatpush1.msra.mxu0 0.0
    %928 = vmatprep.subr.mxu0 0.0
    %929 = vmatpush1.msra.mxu0 %v895
    %930 = vmatprep.subr.mxu0 0.0
    %931 = vmatpush1.msra.mxu0 %v894
    %932 = vmatprep.subr.mxu0 0.0
    %933 = vmatpush2.msra.mxu0 0.0
    %934 = vmatprep.subr.mxu0 0.0
    %935 = vmatpush2.msra.mxu0 0.0
    %936 = vmatprep.subr.mxu0 0.0
    %937 = vmatpush2.msra.mxu0 0.0
    %938 = vmatprep.subr.mxu0 0.0
    %939 = vmatpush2.msra.mxu0 0.0
    %940 = vmatprep.subr.mxu0 0.0
    %941 = vmatpush2.msra.mxu0 0.0
    %942 = vmatprep.subr.mxu0 0.0
    %943 = vmatpush2.msra.mxu0 0.0
    %944 = vmatprep.subr.mxu0 0.0
    %945 = vmatpush2.msra.mxu0 0.0
    %946 = vmatprep.subr.mxu0 0.0
    %947 = vmatpush2.msra.mxu0 0.0
    %948 = vmatprep.subr.mxu0 0.0
    %949 = vmatpush2.msra.mxu0 0.0
    %950 = vmatprep.subr.mxu0 0.0
    %951 = vmatpush2.msra.mxu0 0.0
    %952 = vmatprep.subr.mxu0 0.0
    %953 = vmatpush2.msra.mxu0 0.0
    %954 = vmatprep.subr.mxu0 0.0
    %955 = vmatpush2.msra.mxu0 0.0
    %956 = vmatprep.subr.mxu0 0.0
    %957 = vmatpush2.msra.mxu0 0.0
    %958 = vmatprep.subr.mxu0 0.0
    %959 = vmatpush2.msra.mxu0 0.0
    %960 = vmatprep.subr.mxu0 0.0
    %961 = vmatpush2.msra.mxu0 0.0
    %962 = vmatprep.subr.mxu0 0.0
    %963 = vmatpush2.msra.mxu0 0.0
    %964 = vmatprep.mubr.f32.mxu0 0.0
    %965 = vmatmul.mubr.f32.gmra.mxu0 %v898
    %v966 = vpop.f32.mrf.mxu0
    %v967 = vadd.f32 0.0, %v966
    %v968 = vpop.f32.mrf.mxu0
    %969 = vdwg.mxu0
    %v970 = vxor.u32 %v967, 2147483648
    %v971 = vmul.f32 %v970, 1.442695
    %v972 = vpow.pop %v971
    %v973 = vadd.f32 %v972, 1.0
    %v974 = vrcp.pop %v973
    %v975 = vmul.f32 1.0, %v974
    %v976 = vmul.f32 %v811, %v975
    %v977 = vld [vmem:[%s13] sm:$0xff]
    %v978 = vld [vmem:[%s13 + $0x8] sm:$0xff]
    %v979 = vld [vmem:[%s13 + $0x10] sm:$0xff]
    %v980 = vld [vmem:[%s13 + $0x18] sm:$0xff]
    %v981 = vld [vmem:[%s14] sm:$0x1]
    %v983 = vlaneseq
    %v984 = vshrl.u32 %v983, 7
    %v985 = vsub.s32 0, %v984
    %v986 = vrot.slane %v981, %v985
    %v989 = vsel %vm382, %v976, 0
    %991 = vmatprep.subr.mxu0 0.0
    %992 = vmatpush1.msra.mxu0 0.0
    %993 = vmatprep.subr.mxu0 0.0
    %994 = vmatpush1.msra.mxu0 0.0
    %995 = vmatprep.subr.mxu0 0.0
    %996 = vmatpush1.msra.mxu0 0.0
    %997 = vmatprep.subr.mxu0 0.0
    %998 = vmatpush1.msra.mxu0 0.0
    %999 = vmatprep.subr.mxu0 0.0
    %1000 = vmatpush1.msra.mxu0 0.0
    %1001 = vmatprep.subr.mxu0 0.0
    %1002 = vmatpush1.msra.mxu0 0.0
    %1003 = vmatprep.subr.mxu0 0.0
    %1004 = vmatpush1.msra.mxu0 0.0
    %1005 = vmatprep.subr.mxu0 0.0
    %1006 = vmatpush1.msra.mxu0 0.0
    %1007 = vmatprep.subr.mxu0 0.0
    %1008 = vmatpush1.msra.mxu0 0.0
    %1009 = vmatprep.subr.mxu0 0.0
    %1010 = vmatpush1.msra.mxu0 0.0
    %1011 = vmatprep.subr.mxu0 0.0
    %1012 = vmatpush1.msra.mxu0 0.0
    %1013 = vmatprep.subr.mxu0 0.0
    %1014 = vmatpush1.msra.mxu0 0.0
    %1015 = vmatprep.subr.mxu0 0.0
    %1016 = vmatpush1.msra.mxu0 %v980
    %1017 = vmatprep.subr.mxu0 0.0
    %1018 = vmatpush1.msra.mxu0 %v979
    %1019 = vmatprep.subr.mxu0 0.0
    %1020 = vmatpush1.msra.mxu0 %v978
    %1021 = vmatprep.subr.mxu0 0.0
    %1022 = vmatpush1.msra.mxu0 %v977
    %1023 = vmatprep.subr.mxu0 0.0
    %1024 = vmatpush2.msra.mxu0 0.0
    %1025 = vmatprep.subr.mxu0 0.0
    %1026 = vmatpush2.msra.mxu0 0.0
    %1027 = vmatprep.subr.mxu0 0.0
    %1028 = vmatpush2.msra.mxu0 0.0
    %1029 = vmatprep.subr.mxu0 0.0
    %1030 = vmatpush2.msra.mxu0 0.0
    %1031 = vmatprep.subr.mxu0 0.0
    %1032 = vmatpush2.msra.mxu0 0.0
    %1033 = vmatprep.subr.mxu0 0.0
    %1034 = vmatpush2.msra.mxu0 0.0
    %1035 = vmatprep.subr.mxu0 0.0
    %1036 = vmatpush2.msra.mxu0 0.0
    %1037 = vmatprep.subr.mxu0 0.0
    %1038 = vmatpush2.msra.mxu0 0.0
    %1039 = vmatprep.subr.mxu0 0.0
    %1040 = vmatpush2.msra.mxu0 0.0
    %1041 = vmatprep.subr.mxu0 0.0
    %1042 = vmatpush2.msra.mxu0 0.0
    %1043 = vmatprep.subr.mxu0 0.0
    %1044 = vmatpush2.msra.mxu0 0.0
    %1045 = vmatprep.subr.mxu0 0.0
    %1046 = vmatpush2.msra.mxu0 0.0
    %1047 = vmatprep.subr.mxu0 0.0
    %1048 = vmatpush2.msra.mxu0 0.0
    %1049 = vmatprep.subr.mxu0 0.0
    %1050 = vmatpush2.msra.mxu0 0.0
    %1051 = vmatprep.subr.mxu0 0.0
    %1052 = vmatpush2.msra.mxu0 0.0
    %1053 = vmatprep.subr.mxu0 0.0
    %1054 = vmatpush2.msra.mxu0 0.0
    %1055 = vmatprep.mubr.f32.mxu0 0.0
    %1056 = vmatmul.mubr.f32.gmra.mxu0 %v989
    %v1057 = vpop.f32.mrf.mxu0
    %v1058 = vadd.f32 %v986, %v1057
    %v1059 = vpop.f32.mrf.mxu0
    %1060 = vdwg.mxu0
    %vm1061 = vcmask 9216
    %1062 = vst.msk [vmem:[#allocation2] sm:$0x3] %vm1061, %v1058
    // Predicated region
    $region62: #{tpu_custom_call.1} parent=1 // pred_check
      _
    $region63: #{tpu_custom_call.1} parent=1 // pred_check_branch
      %1064 = sbr.rel (0) target = $region65
    $region64: #{tpu_custom_call.1} parent=1 // pred_region
      %s1066 = ssub.s32 32, 32
      %1067 = vsyncadd [#allocation3], %s1066
      %s1069 = sshll.u32 [#allocation2], 4
      %s1070 = int_to_ptr.vmem [resolvable:$true] %s1069
      %1072 = dma.vmem_to_hbm [thread:$0]  %s1070, 32, %s15, [#allocation3]
    $region65: #{tpu_custom_call.1} parent=1 // pred_fallthru
      _
    // Predicated region
    $region66: #{tpu_custom_call.1} parent=1 // pred_check
      _
    $region67: #{tpu_custom_call.1} parent=1 // pred_check_branch
      %1074 = sbr.rel (0) target = $region69
    $region68: #{tpu_custom_call.1} parent=1 // pred_region
      %1075 = dma.done [#allocation3], 32
    $region69: #{tpu_custom_call.1} parent=1 // pred_fallthru
      _
    %1076 = vsyncpa [#allocation3], 1

</llo_original>
